<compile_context>
chip_gen: v7x
topology: tpu7x:2x2x1
jax: 0.10.0
libtpu: 0.0.40
codegen_flags: <defaults>
</compile_context>

<pallas_src>
import jax
import jax.numpy as jnp
from jax.experimental import pallas as pl
from jax.experimental.pallas import tpu as pltpu

_MAX_LANES = 2048                       # lane-dense target width (multiple of 128)
_DEFAULT_TILE_BYTES = 2 * 1024 * 1024   # ~2 MiB per-array tile


def _reparam_kernel(mean_ref, logvar_ref, eps_ref, z_ref):
    """z = eps * exp(0.5 * logvar) + mean (all math in f32)."""
    std = jnp.exp(0.5 * logvar_ref[...].astype(jnp.float32))
    z = eps_ref[...].astype(jnp.float32) * std + mean_ref[...].astype(jnp.float32)
    z_ref[...] = z.astype(z_ref.dtype)


def _pick_2d_view(n):
    """Lane-dense (rows, lanes) contiguous view of a flat length-n buffer, or None."""
    for lanes in (2048, 1024, 512, 256, 128):
        if lanes <= _MAX_LANES and n % lanes == 0:
            return n // lanes, lanes
    return None


def _pick_row_tile(rows, lanes, itemsize, max_tile_bytes):
    """Largest row tile (multiple of 8, divides rows) within the byte budget."""
    if rows % 8 != 0:
        return rows                     # single full block (block == full dims is legal)
    budget_rows = max(8, max_tile_bytes // (lanes * itemsize))
    tb = 8
    while tb * 2 <= budget_rows and rows % (tb * 2) == 0:
        tb *= 2
    return tb


def simple_sampling_forward(latent_vec, latent_dim, rng_key, *,
                            max_tile_bytes=_DEFAULT_TILE_BYTES):
    """Pallas implementation of simpleSampling.forward.

    latent_vec: (B, 2 * latent_dim)
    returns (z, mean, logvar), each (B, latent_dim)
    """
    B = latent_vec.shape[0]
    assert latent_vec.shape[-1] == 2 * latent_dim
    dtype = latent_vec.dtype

    # De-interleave (mean = even columns, logvar = odd columns), matching
    # torch's .view(-1, L, 2).unbind(-1).  These arrays are returned as-is,
    # so they must be materialized regardless of where the slicing happens.
    lv = latent_vec.reshape(B, latent_dim, 2)
    mean = lv[..., 0]
    logvar = lv[..., 1]

    # Standard-normal noise (matches torch.randn_like).
    eps = jax.random.normal(rng_key, (B, latent_dim), dtype=dtype)

    # Lane-dense, tileable 2-D view of the B * latent_dim elements (free reshape).
    n = B * latent_dim
    view = _pick_2d_view(n)
    if view is None:
        rows, lanes = B, latent_dim     # tiny/awkward shapes: lane dim = full dim
    else:
        rows, lanes = view
    tb = _pick_row_tile(rows, lanes, jnp.dtype(dtype).itemsize, max_tile_bytes)
    grid = (rows // tb,)

    mean2d = mean.reshape(rows, lanes)
    logvar2d = logvar.reshape(rows, lanes)
    eps2d = eps.reshape(rows, lanes)

    block = pl.BlockSpec((tb, lanes), lambda i: (i, 0))

    z2d = pl.pallas_call(
        _reparam_kernel,
        out_shape=jax.ShapeDtypeStruct((rows, lanes), dtype),
        grid=grid,
        in_specs=[block, block, block],
        out_specs=block,
        compiler_params=pltpu.CompilerParams(
            dimension_semantics=("parallel",),
            vmem_limit_bytes=32 * 1024 * 1024,
        ),
    )(mean2d, logvar2d, eps2d)

    z = z2d.reshape(B, latent_dim)
    return z, mean, logvar


if __name__ == "__main__":
    key = jax.random.PRNGKey(0)
    k_in, k_eps, k_in2, k_eps2, k_in3, k_eps3 = jax.random.split(key, 6)

    fwd = jax.jit(simple_sampling_forward, static_argnums=(1,),
                  static_argnames=("max_tile_bytes",))

    # --- primary small demo: B=8, latent_dim=128 (latent_vec is (B, 2L)) ---
    B, L = 8, 128
    latent_vec = jax.random.normal(k_in, (B, 2 * L), dtype=jnp.float32)
    z, mean, logvar = fwd(latent_vec, L, k_eps, max_tile_bytes=_DEFAULT_TILE_BYTES)
    jax.block_until_ready(z)

    lv = latent_vec.reshape(B, L, 2)
    assert z.shape == (B, L) and mean.shape == (B, L) and logvar.shape == (B, L)
    assert bool(jnp.array_equal(mean, lv[..., 0]))
    assert bool(jnp.array_equal(logvar, lv[..., 1]))
    # exact reference check against the same eps
    eps_ref = jax.random.normal(k_eps, (B, L), dtype=jnp.float32)
    z_ref = eps_ref * jnp.exp(0.5 * logvar) + mean
    assert bool(jnp.allclose(z, z_ref, rtol=1e-6, atol=1e-6))
    # implied noise is standard-normal
    eps_imp = (z - mean) / jnp.exp(0.5 * logvar)
    assert bool(jnp.all(jnp.isfinite(eps_imp)))
    m, s = float(jnp.mean(eps_imp)), float(jnp.std(eps_imp))
    assert abs(m) < 0.2 and abs(s - 1.0) < 0.2, (m, s)

    # --- tiny fallback path (no 128-lane factorization): B=2, latent_dim=32 ---
    z2, mean2, logvar2 = fwd(
        jax.random.normal(k_in2, (2, 64), dtype=jnp.float32), 32, k_eps2,
        max_tile_bytes=_DEFAULT_TILE_BYTES)
    jax.block_until_ready(z2)
    assert z2.shape == (2, 32) and bool(jnp.all(jnp.isfinite(z2)))

    # --- multi-tile pipelined path (grid > 1) via a small tile budget ---
    B3, L3 = 128, 256
    lat3 = jax.random.normal(k_in3, (B3, 2 * L3), dtype=jnp.float32)
    z3, mean3, logvar3 = fwd(lat3, L3, k_eps3, max_tile_bytes=64 * 1024)
    jax.block_until_ready(z3)
    eps3 = (z3 - mean3) / jnp.exp(0.5 * logvar3)
    m3, s3 = float(jnp.mean(eps3)), float(jnp.std(eps3))
    assert abs(m3) < 0.1 and abs(s3 - 1.0) < 0.1, (m3, s3)
    # distinct grid steps carry distinct noise
    assert not bool(jnp.allclose(eps3[: B3 // 2], eps3[B3 // 2:]))

    print("KERNEL_OK")
</pallas_src>

<mosaic_0001>
module attributes {stable_mosaic.version = 11 : i64} {
  func.func @_reparam_kernel(%arg0: i32, %arg1: memref<1x1024xf32, #tpu.memory_space<vmem>>, %arg2: memref<1x1024xf32, #tpu.memory_space<vmem>>, %arg3: memref<1x1024xf32, #tpu.memory_space<vmem>>, %arg4: memref<1x1024xf32, #tpu.memory_space<vmem>>) attributes {dimension_semantics = [#tpu.dimension_semantics<parallel>], iteration_bounds = array<i64: 1>, scalar_prefetch = 0 : i64, scratch_operands = 0 : i64, tpu.core_type = #tpu.core_type<tc>, window_params = [{transform_indices = @transform_0, window_bounds = array<i64: 1, 1024>}, {transform_indices = @transform_1, window_bounds = array<i64: 1, 1024>}, {transform_indices = @transform_2, window_bounds = array<i64: 1, 1024>}, {transform_indices = @transform_3, window_bounds = array<i64: 1, 1024>}]} {
    %c0 = arith.constant 0 : index
    %c0_0 = arith.constant 0 : index
    %0 = vector.load %arg2[%c0, %c0_0] : memref<1x1024xf32, #tpu.memory_space<vmem>>, vector<1x1024xf32>
    %cst = arith.constant 5.000000e-01 : f32
    %1 = vector.broadcast %cst : f32 to vector<1x1024xf32>
    %2 = arith.mulf %1, %0 : vector<1x1024xf32>
    %3 = math.exp %2 : vector<1x1024xf32>
    %c0_1 = arith.constant 0 : index
    %c0_2 = arith.constant 0 : index
    %4 = vector.load %arg3[%c0_1, %c0_2] : memref<1x1024xf32, #tpu.memory_space<vmem>>, vector<1x1024xf32>
    %5 = arith.mulf %4, %3 : vector<1x1024xf32>
    %c0_3 = arith.constant 0 : index
    %c0_4 = arith.constant 0 : index
    %6 = vector.load %arg1[%c0_3, %c0_4] : memref<1x1024xf32, #tpu.memory_space<vmem>>, vector<1x1024xf32>
    %7 = arith.addf %5, %6 : vector<1x1024xf32>
    %c0_5 = arith.constant 0 : index
    %c0_6 = arith.constant 0 : index
    %8 = vector.load %arg4[%c0_5, %c0_6] : memref<1x1024xf32, #tpu.memory_space<vmem>>, vector<1x1024xf32>
    tpu.vector_store %arg4[%c0_5, %c0_6], %7 {strides = array<i32>} : memref<1x1024xf32, #tpu.memory_space<vmem>>, vector<1x1024xf32>,
    return
  }
  func.func @transform_0(%arg0: i32) -> (i32, i32) {
    %c0_i32 = arith.constant 0 : i32
    %c0_i32_0 = arith.constant 0 : i32
    return %arg0, %c0_i32 : i32, i32
  }
  func.func @transform_1(%arg0: i32) -> (i32, i32) {
    %c0_i32 = arith.constant 0 : i32
    %c0_i32_0 = arith.constant 0 : i32
    return %arg0, %c0_i32 : i32, i32
  }
  func.func @transform_2(%arg0: i32) -> (i32, i32) {
    %c0_i32 = arith.constant 0 : i32
    %c0_i32_0 = arith.constant 0 : i32
    return %arg0, %c0_i32 : i32, i32
  }
  func.func @transform_3(%arg0: i32) -> (i32, i32) {
    %c0_i32 = arith.constant 0 : i32
    %c0_i32_0 = arith.constant 0 : i32
    return %arg0, %c0_i32 : i32, i32
  }
}

</mosaic_0001>

<llo_original>
// kernel: simple_sampling_forward.1
$region0: #{simple_sampling_forward.1}
  #allocation0 [shape = 'u32[]', space=smem, size = 0x4, offset = 0x4, fixed_abs, tag = 'smem constant byte address 0x4 - core index']
  #allocation1 [shape = 'u32[144,128]{1,0:T(1,128)}', space=vmem, size = 0x12000, scoped, tag = 'internal scratch']
  %s0 = inlined_call_operand.vmem [shape: f32[1,1024], index: 0, kind: input, shape index: {}]
  %s1 = inlined_call_operand.vmem [shape: f32[1,1024], index: 1, kind: input, shape index: {}]
  %s2 = inlined_call_operand.vmem [shape: f32[1,1024], index: 2, kind: input, shape index: {}]
  %s3 = inlined_call_operand.hbm [shape: f32[1,1024], index: 3, kind: output, shape index: {}]
  %s4 = sld [smem:[#allocation0]]
  $region22: #{simple_sampling_forward.1} parent=0
    _
  %s6 = ssub.s32 1, %s4
  %s7 = scalar_select 0, %s6, %s4
  $region1: #{simple_sampling_forward.1} parent=0
    #allocation2 [shape = 'u8[4096]{0}', space=vmem, size = 0x1000, scoped, tag = 'output window, operand 0, single buffered']
    #allocation3 [shape = 's32[1]{0}', space=sflag, size = 0x4, scoped, tag = 'scoped memory for simple_sampling_forward.1']
    %8 = vsyncpa [#allocation3], 0
    // Predicated region
    $region2: #{simple_sampling_forward.1} parent=1 // pred_check
      _
    $region3: #{simple_sampling_forward.1} parent=1 // pred_check_branch
      %10 = sbr.rel (0) target = $region5
    $region4: #{simple_sampling_forward.1} parent=1 // pred_region
      _
    $region5: #{simple_sampling_forward.1} parent=1 // pred_fallthru
      _
    // Predicated region
    $region6: #{simple_sampling_forward.1} parent=1 // pred_check
      _
    $region7: #{simple_sampling_forward.1} parent=1 // pred_check_branch
      %12 = sbr.rel (0) target = $region9
    $region8: #{simple_sampling_forward.1} parent=1 // pred_region
      _
    $region9: #{simple_sampling_forward.1} parent=1 // pred_fallthru
      _
    // Predicated region
    $region10: #{simple_sampling_forward.1} parent=1 // pred_check
      _
    $region11: #{simple_sampling_forward.1} parent=1 // pred_check_branch
      %14 = sbr.rel (0) target = $region13
    $region12: #{simple_sampling_forward.1} parent=1 // pred_region
      _
    $region13: #{simple_sampling_forward.1} parent=1 // pred_fallthru
      _
    %v15 = vld [vmem:[%s1] sm:$0xff]
    %v16 = vmul.f32 %v15, 0.5
    %v17 = vmul.f32 %v16, 1.442695
    %v18 = vpow.pop %v17
    %v19 = vld [vmem:[%s2] sm:$0xff]
    %v20 = vmul.f32 %v19, %v18
    %v21 = vld [vmem:[%s0] sm:$0xff]
    %v22 = vadd.f32 %v20, %v21
    %23 = vst [vmem:[#allocation2] sm:$0xff] %v22
    // Predicated region
    $region14: #{simple_sampling_forward.1} parent=1 // pred_check
      _
    $region15: #{simple_sampling_forward.1} parent=1 // pred_check_branch
      %25 = sbr.rel (0) target = $region17
    $region16: #{simple_sampling_forward.1} parent=1 // pred_region
      %s27 = ssub.s32 128, 128
      %28 = vsyncadd [#allocation3], %s27
      %s30 = sshll.u32 [#allocation2], 4
      %s31 = int_to_ptr.vmem [resolvable:$true] %s30
      %33 = dma.vmem_to_hbm [thread:$0]  %s31, 128, %s3, [#allocation3]
    $region17: #{simple_sampling_forward.1} parent=1 // pred_fallthru
      _
    // Predicated region
    $region18: #{simple_sampling_forward.1} parent=1 // pred_check
      _
    $region19: #{simple_sampling_forward.1} parent=1 // pred_check_branch
      %35 = sbr.rel (0) target = $region21
    $region20: #{simple_sampling_forward.1} parent=1 // pred_region
      %36 = dma.done [#allocation3], 128
    $region21: #{simple_sampling_forward.1} parent=1 // pred_fallthru
      _
    %37 = vsyncpa [#allocation3], 1

</llo_original>
